<compile_context>
chip_gen: v6e
topology: v6e:2x2x1
jax: 0.10.0
libtpu: 0.0.40
codegen_flags: <defaults>
</compile_context>

<pallas_src>
import functools

import jax
import jax.numpy as jnp
from jax import lax
from jax.experimental import pallas as pl
from jax.experimental.pallas import tpu as pltpu

BN_EPS = 1e-5
LANE = 128
SUBLANE = 8

# MXU-native dtype for matmul operands (f32 accumulation is always used).
MATMUL_DTYPE = jnp.bfloat16


def _round_up(n, m):
    return ((n + m - 1) // m) * m


def _pad2d(a, rows, cols):
    r, c = a.shape
    return jnp.pad(a, ((0, rows - r), (0, cols - c)))


def _default_vmem_limit():
    # ~64 MiB on v5e/v6e (128 MiB physical VMEM), ~48 MiB on v7x (64 MiB).
    try:
        cap = int(pltpu.get_tpu_info().vmem_capacity_bytes)
    except Exception:
        cap = 128 * 1024 * 1024
    return min(64 * 1024 * 1024, (cap * 3) // 4)


# --------------------------------------------------------------------------
# Pass A: full-batch stats of h1 = x @ W1^T + b1  ->  folded BN1 scale/shift.
# h1 itself is NOT written to HBM (Pass B recomputes it).
# --------------------------------------------------------------------------
def _fc1_stats_kernel(x_ref, w1_ref, b1_ref, g1_ref, be1_ref,
                      scale_ref, shift_ref, sum_sc, sq_sc,
                      *, batch_real, batch_padded, batch_tile):
    i = pl.program_id(0)
    n = pl.num_programs(0)

    @pl.when(i == 0)
    def _():
        sum_sc[...] = jnp.zeros_like(sum_sc)
        sq_sc[...] = jnp.zeros_like(sq_sc)

    h = jnp.dot(x_ref[...], w1_ref[...],
                preferred_element_type=jnp.float32) + b1_ref[...]

    if batch_padded != batch_real:
        rows_last = batch_real - (batch_padded // batch_tile - 1) * batch_tile

        @pl.when(i < n - 1)
        def _():
            sum_sc[...] += jnp.sum(h, axis=0, keepdims=True)
            sq_sc[...] += jnp.sum(h * h, axis=0, keepdims=True)

        @pl.when(i == n - 1)
        def _():
            # Only the last tile has zero-padded batch rows; mask them out.
            row = lax.broadcasted_iota(jnp.int32, (batch_tile, 1), 0)
            hm = jnp.where(row < rows_last, h, 0.0)
            sum_sc[...] += jnp.sum(hm, axis=0, keepdims=True)
            sq_sc[...] += jnp.sum(hm * h, axis=0, keepdims=True)
    else:
        sum_sc[...] += jnp.sum(h, axis=0, keepdims=True)
        sq_sc[...] += jnp.sum(h * h, axis=0, keepdims=True)

    @pl.when(i == n - 1)
    def _():
        inv_b = 1.0 / batch_real
        mean = sum_sc[...] * inv_b
        var = jnp.maximum(sq_sc[...] * inv_b - mean * mean, 0.0)  # biased var
        scale = g1_ref[...] * lax.rsqrt(var + BN_EPS)
        scale_ref[...] = scale
        shift_ref[...] = be1_ref[...] - mean * scale


# --------------------------------------------------------------------------
# Pass B: recompute h1, apply folded BN1 + PReLU1 -> inter (stored),
#         h2 = inter @ W2^T + b2 (stored), full-batch stats of h2 -> BN2 fold.
# --------------------------------------------------------------------------
def _fc1_apply_fc2_stats_kernel(x_ref, w1_ref, b1_ref, sc1_ref, sh1_ref,
                                a1_ref, w2_ref, b2_ref, g2_ref, be2_ref,
                                inter_ref, h2_ref, sc2_ref, sh2_ref,
                                sum_sc, sq_sc,
                                *, batch_real, batch_padded, batch_tile,
                                matmul_dtype):
    i = pl.program_id(0)
    n = pl.num_programs(0)

    @pl.when(i == 0)
    def _():
        sum_sc[...] = jnp.zeros_like(sum_sc)
        sq_sc[...] = jnp.zeros_like(sq_sc)

    # Recompute h1 (cheaper than an h1 HBM round trip: ~2*dp*f1p flops/row vs
    # 8 bytes/elem of HBM traffic -- far below the flop/byte roofline).
    h1 = jnp.dot(x_ref[...], w1_ref[...],
                 preferred_element_type=jnp.float32) + b1_ref[...]
    hn = h1 * sc1_ref[...] + sh1_ref[...]          # folded BN1 (2 ops/elem)
    alpha1 = a1_ref[0, 0]                          # SMEM scalar
    inter = jnp.where(hn >= 0.0, hn, alpha1 * hn)
    inter_ref[...] = inter.astype(inter_ref.dtype)  # store early (vreg relief)

    h2 = jnp.dot(inter.astype(matmul_dtype), w2_ref[...],
                 preferred_element_type=jnp.float32) + b2_ref[...]
    h2_ref[...] = h2.astype(h2_ref.dtype)

    if batch_padded != batch_real:
        rows_last = batch_real - (batch_padded // batch_tile - 1) * batch_tile

        @pl.when(i < n - 1)
        def _():
            sum_sc[...] += jnp.sum(h2, axis=0, keepdims=True)
            sq_sc[...] += jnp.sum(h2 * h2, axis=0, keepdims=True)

        @pl.when(i == n - 1)
        def _():
            row = lax.broadcasted_iota(jnp.int32, (batch_tile, 1), 0)
            h2m = jnp.where(row < rows_last, h2, 0.0)
            sum_sc[...] += jnp.sum(h2m, axis=0, keepdims=True)
            sq_sc[...] += jnp.sum(h2m * h2, axis=0, keepdims=True)
    else:
        sum_sc[...] += jnp.sum(h2, axis=0, keepdims=True)
        sq_sc[...] += jnp.sum(h2 * h2, axis=0, keepdims=True)

    @pl.when(i == n - 1)
    def _():
        inv_b = 1.0 / batch_real
        mean = sum_sc[...] * inv_b
        var = jnp.maximum(sq_sc[...] * inv_b - mean * mean, 0.0)
        scale = g2_ref[...] * lax.rsqrt(var + BN_EPS)
        sc2_ref[...] = scale
        sh2_ref[...] = be2_ref[...] - mean * scale


# --------------------------------------------------------------------------
# Pass C: folded BN2 -> PReLU2 -> masked softmax over features.
# --------------------------------------------------------------------------
def _bn_act_softmax_kernel(h2_ref, sc2_ref, sh2_ref, a2_ref, soft_ref,
                           *, out_dim):
    hn = h2_ref[...] * sc2_ref[...] + sh2_ref[...]
    alpha = a2_ref[0, 0]                           # SMEM scalar
    o = jnp.where(hn >= 0.0, hn, alpha * hn)

    fp = soft_ref.shape[1]
    if fp != out_dim:
        # Mask padded feature lanes out of the softmax.
        col = lax.broadcasted_iota(jnp.int32, (1, fp), 1)
        o = jnp.where(col < out_dim, o, -1e30)

    m = jnp.max(o, axis=1, keepdims=True)
    e = jnp.exp(o - m)
    denom = jnp.sum(e, axis=1, keepdims=True)
    r = pl.reciprocal(denom, approx=True)          # EUP slot (free beside exp)
    r = r * (2.0 - denom * r)                      # Newton -> ~f32 accuracy
    r = r * (2.0 - denom * r)
    soft_ref[...] = (e * r).astype(soft_ref.dtype)


# --------------------------------------------------------------------------
# Wrapper
# --------------------------------------------------------------------------
def gdn_forward(x, params, *, batch_tile=512, matmul_dtype=MATMUL_DTYPE,
                vmem_limit_bytes=None):
    """x: (B, inplanes) float32. Returns (intermediate, softmax(out))."""
    B, inplanes = x.shape
    inter_dim = params["w1"].shape[0]
    out_dim = params["w2"].shape[0]
    f32 = jnp.float32

    dp = _round_up(inplanes, LANE)
    f1p = _round_up(inter_dim, LANE)
    f2p = _round_up(out_dim, LANE)

    # Dtype-aware sublane alignment for the tiled (batch) axis.
    msize = jnp.dtype(matmul_dtype).itemsize
    row_align = SUBLANE * max(1, 4 // msize)      # 8 for f32, 16 for bf16
    tb = _round_up(min(batch_tile, _round_up(B, row_align)), row_align)
    bp = _round_up(B, tb)
    n_tiles = bp // tb

    if vmem_limit_bytes is None:
        vmem_limit_bytes = _default_vmem_limit()

    # Lane-pad everything to 128 multiples; zero-pad extra batch rows.
    x_p = _pad2d(x.astype(matmul_dtype), bp, dp)
    w1_p = _pad2d(params["w1"].T.astype(matmul_dtype), dp, f1p)
    w2_p = _pad2d(params["w2"].T.astype(matmul_dtype), f1p, f2p)
    b1_p = _pad2d(params["b1"].reshape(1, -1).astype(f32), 1, f1p)
    b2_p = _pad2d(params["b2"].reshape(1, -1).astype(f32), 1, f2p)
    g1_p = _pad2d(params["bn1_gamma"].reshape(1, -1).astype(f32), 1, f1p)
    be1_p = _pad2d(params["bn1_beta"].reshape(1, -1).astype(f32), 1, f1p)
    g2_p = _pad2d(params["bn2_gamma"].reshape(1, -1).astype(f32), 1, f2p)
    be2_p = _pad2d(params["bn2_beta"].reshape(1, -1).astype(f32), 1, f2p)
    a1 = params["prelu1"].reshape(1, 1).astype(f32)
    a2 = params["prelu2"].reshape(1, 1).astype(f32)

    def tiled(cols):
        return pl.BlockSpec((tb, cols), lambda i: (i, 0))

    def full(rows, cols):
        return pl.BlockSpec((rows, cols), lambda i: (0, 0))

    smem = pl.BlockSpec(memory_space=pltpu.MemorySpace.SMEM)

    def cparams(sem):
        return pltpu.CompilerParams(dimension_semantics=(sem,),
                                    vmem_limit_bytes=vmem_limit_bytes)

    # ---- Pass A: full-batch stats of h1 -> folded BN1 scale/shift ----
    scale1, shift1 = pl.pallas_call(
        functools.partial(_fc1_stats_kernel, batch_real=B, batch_padded=bp,
                          batch_tile=tb),
        grid=(n_tiles,),
        in_specs=[tiled(dp), full(dp, f1p), full(1, f1p), full(1, f1p),
                  full(1, f1p)],
        out_specs=(full(1, f1p), full(1, f1p)),
        out_shape=(jax.ShapeDtypeStruct((1, f1p), f32),
                   jax.ShapeDtypeStruct((1, f1p), f32)),
        scratch_shapes=[pltpu.VMEM((1, f1p), f32),
                        pltpu.VMEM((1, f1p), f32)],
        compiler_params=cparams("arbitrary"),
        cost_estimate=pl.CostEstimate(
            flops=2 * bp * dp * f1p + 6 * bp * f1p,
            transcendentals=f1p,
            bytes_accessed=msize * (bp * dp + dp * f1p) + 4 * 7 * f1p),
    )(x_p, w1_p, b1_p, g1_p, be1_p)

    # ---- Pass B: BN1+PReLU1 -> inter ; Linear2 ; stats -> BN2 scale/shift ----
    inter_p, h2, scale2, shift2 = pl.pallas_call(
        functools.partial(_fc1_apply_fc2_stats_kernel, batch_real=B,
                          batch_padded=bp, batch_tile=tb,
                          matmul_dtype=matmul_dtype),
        grid=(n_tiles,),
        in_specs=[tiled(dp), full(dp, f1p), full(1, f1p), full(1, f1p),
                  full(1, f1p), smem, full(f1p, f2p), full(1, f2p),
                  full(1, f2p), full(1, f2p)],
        out_specs=(tiled(f1p), tiled(f2p), full(1, f2p), full(1, f2p)),
        out_shape=(jax.ShapeDtypeStruct((bp, f1p), f32),
                   jax.ShapeDtypeStruct((bp, f2p), f32),
                   jax.ShapeDtypeStruct((1, f2p), f32),
                   jax.ShapeDtypeStruct((1, f2p), f32)),
        scratch_shapes=[pltpu.VMEM((1, f2p), f32),
                        pltpu.VMEM((1, f2p), f32)],
        compiler_params=cparams("arbitrary"),
        cost_estimate=pl.CostEstimate(
            flops=(2 * bp * dp * f1p + 2 * bp * f1p * f2p
                   + 10 * bp * (f1p + f2p)),
            transcendentals=f2p,
            bytes_accessed=(msize * (bp * dp + dp * f1p + f1p * f2p)
                            + 4 * (bp * f1p + bp * f2p + 4 * f1p + 6 * f2p))),
    )(x_p, w1_p, b1_p, scale1, shift1, a1, w2_p, b2_p, g2_p, be2_p)

    # ---- Pass C: folded BN2 + PReLU2 + masked softmax ----
    soft_p = pl.pallas_call(
        functools.partial(_bn_act_softmax_kernel, out_dim=out_dim),
        grid=(n_tiles,),
        in_specs=[tiled(f2p), full(1, f2p), full(1, f2p), smem],
        out_specs=tiled(f2p),
        out_shape=jax.ShapeDtypeStruct((bp, f2p), f32),
        compiler_params=cparams("parallel"),
        cost_estimate=pl.CostEstimate(
            flops=10 * bp * f2p,
            transcendentals=bp * f2p + bp,
            bytes_accessed=4 * (2 * bp * f2p + 2 * f2p)),
    )(h2, scale2, shift2, a2)

    # Slice padded lanes / rows back off.
    return inter_p[:B, :inter_dim], soft_p[:B, :out_dim]


# --------------------------------------------------------------------------
# Params / reference
# --------------------------------------------------------------------------
def init_gdn_params(key, inplanes, intermediate_dim, outplanes):
    k1, k2, k3, k4 = jax.random.split(key, 4)
    bound1 = 1.0 / jnp.sqrt(inplanes)
    bound2 = 1.0 / jnp.sqrt(intermediate_dim)
    return {
        "w1": jax.random.uniform(k1, (intermediate_dim, inplanes),
                                 minval=-bound1, maxval=bound1, dtype=jnp.float32),
        "b1": jax.random.uniform(k2, (intermediate_dim,),
                                 minval=-bound1, maxval=bound1, dtype=jnp.float32),
        "w2": jax.random.uniform(k3, (outplanes, intermediate_dim),
                                 minval=-bound2, maxval=bound2, dtype=jnp.float32),
        "b2": jax.random.uniform(k4, (outplanes,),
                                 minval=-bound2, maxval=bound2, dtype=jnp.float32),
        "bn1_gamma": jnp.ones((intermediate_dim,), jnp.float32),
        "bn1_beta": jnp.zeros((intermediate_dim,), jnp.float32),
        "bn2_gamma": jnp.ones((outplanes,), jnp.float32),
        "bn2_beta": jnp.zeros((outplanes,), jnp.float32),
        "prelu1": jnp.array([0.25], jnp.float32),
        "prelu2": jnp.array([0.25], jnp.float32),
    }


def gdn_reference(x, params):
    def fc(x, w, b, g, be, a):
        h = x @ w.T + b
        mean = jnp.mean(h, axis=0, keepdims=True)
        var = jnp.mean((h - mean) ** 2, axis=0, keepdims=True)
        hn = (h - mean) / jnp.sqrt(var + BN_EPS) * g + be
        return jnp.where(hn >= 0, hn, a * hn)

    inter = fc(x, params["w1"], params["b1"], params["bn1_gamma"],
               params["bn1_beta"], params["prelu1"][0])
    out = fc(inter, params["w2"], params["b2"], params["bn2_gamma"],
             params["bn2_beta"], params["prelu2"][0])
    return inter, jax.nn.softmax(out, axis=1)


if __name__ == "__main__":
    INPLANES, INTER_DIM, OUTPLANES = 32, 64, 16

    key = jax.random.PRNGKey(0)
    kx, kp = jax.random.split(key)
    params = init_gdn_params(kp, INPLANES, INTER_DIM, OUTPLANES)

    def check(B, batch_tile, matmul_dtype, tol_i, tol_s):
        x = jax.random.normal(kx, (B, INPLANES), dtype=jnp.float32)
        inter, soft = gdn_forward(x, params, batch_tile=batch_tile,
                                  matmul_dtype=matmul_dtype)
        jax.block_until_ready((inter, soft))
        inter_r, soft_r = gdn_reference(x, params)
        assert inter.shape == (B, INTER_DIM) and soft.shape == (B, OUTPLANES)
        assert jnp.allclose(inter, inter_r, atol=tol_i, rtol=tol_i), "intermediate mismatch"
        assert jnp.allclose(soft, soft_r, atol=tol_s, rtol=tol_s), "softmax mismatch"
        assert jnp.allclose(jnp.sum(soft, axis=1), 1.0, atol=1e-4)

    # f32 path, multi-tile grid with a partially-padded last batch tile (20->24).
    check(B=20, batch_tile=8, matmul_dtype=jnp.float32, tol_i=2e-4, tol_s=1e-4)
    # f32 path, single-tile (whole batch in one block).
    check(B=8, batch_tile=512, matmul_dtype=jnp.float32, tol_i=2e-4, tol_s=1e-4)
    # Production bf16-MXU path (default dtype): looser tolerance vs f32 reference.
    check(B=20, batch_tile=16, matmul_dtype=jnp.bfloat16, tol_i=5e-2, tol_s=1e-2)

    print("KERNEL_OK")
</pallas_src>

<mosaic_0001>
module attributes {stable_mosaic.version = 11 : i64} {
  func.func @_fc1_stats_kernel(%arg0: i32, %arg1: memref<8x128xf32, #tpu.memory_space<vmem>>, %arg2: memref<128x128xf32, #tpu.memory_space<vmem>>, %arg3: memref<1x128xf32, #tpu.memory_space<vmem>>, %arg4: memref<1x128xf32, #tpu.memory_space<vmem>>, %arg5: memref<1x128xf32, #tpu.memory_space<vmem>>, %arg6: memref<1x128xf32, #tpu.memory_space<vmem>>, %arg7: memref<1x128xf32, #tpu.memory_space<vmem>>, %arg8: memref<1x128xf32, #tpu.memory_space<vmem>>, %arg9: memref<1x128xf32, #tpu.memory_space<vmem>>) attributes {dimension_semantics = [#tpu.dimension_semantics<arbitrary>], iteration_bounds = array<i64: 3>, scalar_prefetch = 0 : i64, scratch_operands = 2 : i64, tpu.core_type = #tpu.core_type<tc>, window_params = [{transform_indices = @transform_0, window_bounds = array<i64: 8, 128>}, {pipeline_mode = #tpu.pipeline_mode<synchronous>, transform_indices = @transform_1, window_bounds = array<i64: 128, 128>}, {pipeline_mode = #tpu.pipeline_mode<synchronous>, transform_indices = @transform_2, window_bounds = array<i64: 1, 128>}, {pipeline_mode = #tpu.pipeline_mode<synchronous>, transform_indices = @transform_3, window_bounds = array<i64: 1, 128>}, {pipeline_mode = #tpu.pipeline_mode<synchronous>, transform_indices = @transform_4, window_bounds = array<i64: 1, 128>}, {pipeline_mode = #tpu.pipeline_mode<synchronous>, transform_indices = @transform_5, window_bounds = array<i64: 1, 128>}, {pipeline_mode = #tpu.pipeline_mode<synchronous>, transform_indices = @transform_6, window_bounds = array<i64: 1, 128>}]} {
    %c0_i32 = arith.constant 0 : i32
    %0 = arith.cmpi eq, %arg0, %c0_i32 : i32
    %1 = arith.extui %0 : i1 to i32
    %c0_i32_0 = arith.constant 0 : i32
    %2 = arith.cmpi ne, %1, %c0_i32_0 : i32
    scf.if %2 {
      %cst_11 = arith.constant 0.000000e+00 : f32
      %18 = vector.broadcast %cst_11 : f32 to vector<1x128xf32>
      %c0_12 = arith.constant 0 : index
      %c0_13 = arith.constant 0 : index
      %19 = vector.load %arg8[%c0_12, %c0_13] : memref<1x128xf32, #tpu.memory_space<vmem>>, vector<1x128xf32>
      tpu.vector_store %arg8[%c0_12, %c0_13], %18 {strides = array<i32>} : memref<1x128xf32, #tpu.memory_space<vmem>>, vector<1x128xf32>,
      %cst_14 = arith.constant 0.000000e+00 : f32
      %20 = vector.broadcast %cst_14 : f32 to vector<1x128xf32>
      %c0_15 = arith.constant 0 : index
      %c0_16 = arith.constant 0 : index
      %21 = vector.load %arg9[%c0_15, %c0_16] : memref<1x128xf32, #tpu.memory_space<vmem>>, vector<1x128xf32>
      tpu.vector_store %arg9[%c0_15, %c0_16], %20 {strides = array<i32>} : memref<1x128xf32, #tpu.memory_space<vmem>>, vector<1x128xf32>,
    } else {
    }
    %c0 = arith.constant 0 : index
    %c0_1 = arith.constant 0 : index
    %3 = vector.load %arg1[%c0, %c0_1] : memref<8x128xf32, #tpu.memory_space<vmem>>, vector<8x128xf32>
    %c0_2 = arith.constant 0 : index
    %c0_3 = arith.constant 0 : index
    %4 = vector.load %arg2[%c0_2, %c0_3] : memref<128x128xf32, #tpu.memory_space<vmem>>, vector<128x128xf32>
    %cst = arith.constant dense<0.000000e+00> : vector<8x128xf32>
    %5 = tpu.matmul %3, %4, %cst {dimension_numbers = #tpu.dot_dimension_numbers<[1], [0], [0], [1], [0, 0, 1, 1], [], []>} : vector<8x128xf32>, vector<128x128xf32>, vector<8x128xf32> -> vector<8x128xf32>
    %c0_4 = arith.constant 0 : index
    %c0_5 = arith.constant 0 : index
    %6 = vector.load %arg3[%c0_4, %c0_5] : memref<1x128xf32, #tpu.memory_space<vmem>>, vector<1x128xf32>
    %7 = vector.broadcast %6 : vector<1x128xf32> to vector<8x128xf32>
    %8 = arith.addf %5, %7 : vector<8x128xf32>
    %c2_i32 = arith.constant 2 : i32
    %9 = arith.cmpi slt, %arg0, %c2_i32 : i32
    %10 = arith.extui %9 : i1 to i32
    %c0_i32_6 = arith.constant 0 : i32
    %11 = arith.cmpi ne, %10, %c0_i32_6 : i32
    scf.if %11 {
      %c0_11 = arith.constant 0 : index
      %c0_12 = arith.constant 0 : index
      %18 = vector.load %arg8[%c0_11, %c0_12] : memref<1x128xf32, #tpu.memory_space<vmem>>, vector<1x128xf32>
      %cst_13 = arith.constant dense<0.000000e+00> : vector<128xf32>
      %19 = vector.multi_reduction <add>, %8, %cst_13 [0] : vector<8x128xf32> to vector<128xf32>
      %20 = vector.shape_cast %19 : vector<128xf32> to vector<1x128xf32>
      %21 = arith.addf %18, %20 : vector<1x128xf32>
      %c0_14 = arith.constant 0 : index
      %c0_15 = arith.constant 0 : index
      %22 = vector.load %arg8[%c0_14, %c0_15] : memref<1x128xf32, #tpu.memory_space<vmem>>, vector<1x128xf32>
      tpu.vector_store %arg8[%c0_14, %c0_15], %21 {strides = array<i32>} : memref<1x128xf32, #tpu.memory_space<vmem>>, vector<1x128xf32>,
      %c0_16 = arith.constant 0 : index
      %c0_17 = arith.constant 0 : index
      %23 = vector.load %arg9[%c0_16, %c0_17] : memref<1x128xf32, #tpu.memory_space<vmem>>, vector<1x128xf32>
      %24 = arith.mulf %8, %8 : vector<8x128xf32>
      %cst_18 = arith.constant dense<0.000000e+00> : vector<128xf32>
      %25 = vector.multi_reduction <add>, %24, %cst_18 [0] : vector<8x128xf32> to vector<128xf32>
      %26 = vector.shape_cast %25 : vector<128xf32> to vector<1x128xf32>
      %27 = arith.addf %23, %26 : vector<1x128xf32>
      %c0_19 = arith.constant 0 : index
      %c0_20 = arith.constant 0 : index
      %28 = vector.load %arg9[%c0_19, %c0_20] : memref<1x128xf32, #tpu.memory_space<vmem>>, vector<1x128xf32>
      tpu.vector_store %arg9[%c0_19, %c0_20], %27 {strides = array<i32>} : memref<1x128xf32, #tpu.memory_space<vmem>>, vector<1x128xf32>,
    } else {
    }
    %c2_i32_7 = arith.constant 2 : i32
    %12 = arith.cmpi eq, %arg0, %c2_i32_7 : i32
    %13 = arith.extui %12 : i1 to i32
    %c0_i32_8 = arith.constant 0 : i32
    %14 = arith.cmpi ne, %13, %c0_i32_8 : i32
    scf.if %14 {
      %18 = tpu.iota {dimensions = array<i32: 0>} : vector<8x1xi32>
      %c4_i32 = arith.constant 4 : i32
      %19 = vector.broadcast %c4_i32 : i32 to vector<8x1xi32>
      %20 = arith.cmpi slt, %18, %19 : vector<8x1xi32>
      %cst_11 = arith.constant 0.000000e+00 : f32
      %21 = vector.shape_cast %20 : vector<8x1xi1> to vector<8x1xi1>
      %22 = vector.broadcast %21 : vector<8x1xi1> to vector<8x128xi1>
      %23 = vector.broadcast %cst_11 : f32 to vector<8x128xf32>
      %24 = arith.select %22, %8, %23 : vector<8x128xi1>, vector<8x128xf32>
      %c0_12 = arith.constant 0 : index
      %c0_13 = arith.constant 0 : index
      %25 = vector.load %arg8[%c0_12, %c0_13] : memref<1x128xf32, #tpu.memory_space<vmem>>, vector<1x128xf32>
      %cst_14 = arith.constant dense<0.000000e+00> : vector<128xf32>
      %26 = vector.multi_reduction <add>, %24, %cst_14 [0] : vector<8x128xf32> to vector<128xf32>
      %27 = vector.shape_cast %26 : vector<128xf32> to vector<1x128xf32>
      %28 = arith.addf %25, %27 : vector<1x128xf32>
      %c0_15 = arith.constant 0 : index
      %c0_16 = arith.constant 0 : index
      %29 = vector.load %arg8[%c0_15, %c0_16] : memref<1x128xf32, #tpu.memory_space<vmem>>, vector<1x128xf32>
      tpu.vector_store %arg8[%c0_15, %c0_16], %28 {strides = array<i32>} : memref<1x128xf32, #tpu.memory_space<vmem>>, vector<1x128xf32>,
      %c0_17 = arith.constant 0 : index
      %c0_18 = arith.constant 0 : index
      %30 = vector.load %arg9[%c0_17, %c0_18] : memref<1x128xf32, #tpu.memory_space<vmem>>, vector<1x128xf32>
      %31 = arith.mulf %24, %8 : vector<8x128xf32>
      %cst_19 = arith.constant dense<0.000000e+00> : vector<128xf32>
      %32 = vector.multi_reduction <add>, %31, %cst_19 [0] : vector<8x128xf32> to vector<128xf32>
      %33 = vector.shape_cast %32 : vector<128xf32> to vector<1x128xf32>
      %34 = arith.addf %30, %33 : vector<1x128xf32>
      %c0_20 = arith.constant 0 : index
      %c0_21 = arith.constant 0 : index
      %35 = vector.load %arg9[%c0_20, %c0_21] : memref<1x128xf32, #tpu.memory_space<vmem>>, vector<1x128xf32>
      tpu.vector_store %arg9[%c0_20, %c0_21], %34 {strides = array<i32>} : memref<1x128xf32, #tpu.memory_space<vmem>>, vector<1x128xf32>,
    } else {
    }
    %c2_i32_9 = arith.constant 2 : i32
    %15 = arith.cmpi eq, %arg0, %c2_i32_9 : i32
    %16 = arith.extui %15 : i1 to i32
    %c0_i32_10 = arith.constant 0 : i32
    %17 = arith.cmpi ne, %16, %c0_i32_10 : i32
    scf.if %17 {
      %c0_11 = arith.constant 0 : index
      %c0_12 = arith.constant 0 : index
      %18 = vector.load %arg8[%c0_11, %c0_12] : memref<1x128xf32, #tpu.memory_space<vmem>>, vector<1x128xf32>
      %cst_13 = arith.constant 5.000000e-02 : f32
      %19 = vector.broadcast %cst_13 : f32 to vector<1x128xf32>
      %20 = arith.mulf %18, %19 : vector<1x128xf32>
      %c0_14 = arith.constant 0 : index
      %c0_15 = arith.constant 0 : index
      %21 = vector.load %arg9[%c0_14, %c0_15] : memref<1x128xf32, #tpu.memory_space<vmem>>, vector<1x128xf32>
      %cst_16 = arith.constant 5.000000e-02 : f32
      %22 = vector.broadcast %cst_16 : f32 to vector<1x128xf32>
      %23 = arith.mulf %21, %22 : vector<1x128xf32>
      %24 = arith.mulf %20, %20 : vector<1x128xf32>
      %25 = arith.subf %23, %24 : vector<1x128xf32>
      %cst_17 = arith.constant 0.000000e+00 : f32
      %26 = vector.broadcast %cst_17 : f32 to vector<1x128xf32>
      %27 = arith.maximumf %25, %26 : vector<1x128xf32>
      %c0_18 = arith.constant 0 : index
      %c0_19 = arith.constant 0 : index
      %28 = vector.load %arg4[%c0_18, %c0_19] : memref<1x128xf32, #tpu.memory_space<vmem>>, vector<1x128xf32>
      %cst_20 = arith.constant 9.99999974E-6 : f32
      %29 = vector.broadcast %cst_20 : f32 to vector<1x128xf32>
      %30 = arith.addf %27, %29 : vector<1x128xf32>
      %31 = math.rsqrt %30 : vector<1x128xf32>
      %32 = arith.mulf %28, %31 : vector<1x128xf32>
      %c0_21 = arith.constant 0 : index
      %c0_22 = arith.constant 0 : index
      %33 = vector.load %arg6[%c0_21, %c0_22] : memref<1x128xf32, #tpu.memory_space<vmem>>, vector<1x128xf32>
      tpu.vector_store %arg6[%c0_21, %c0_22], %32 {strides = array<i32>} : memref<1x128xf32, #tpu.memory_space<vmem>>, vector<1x128xf32>,
      %c0_23 = arith.constant 0 : index
      %c0_24 = arith.constant 0 : index
      %34 = vector.load %arg5[%c0_23, %c0_24] : memref<1x128xf32, #tpu.memory_space<vmem>>, vector<1x128xf32>
      %35 = arith.mulf %20, %32 : vector<1x128xf32>
      %36 = arith.subf %34, %35 : vector<1x128xf32>
      %c0_25 = arith.constant 0 : index
      %c0_26 = arith.constant 0 : index
      %37 = vector.load %arg7[%c0_25, %c0_26] : memref<1x128xf32, #tpu.memory_space<vmem>>, vector<1x128xf32>
      tpu.vector_store %arg7[%c0_25, %c0_26], %36 {strides = array<i32>} : memref<1x128xf32, #tpu.memory_space<vmem>>, vector<1x128xf32>,
    } else {
    }
    return
  }
  func.func @transform_0(%arg0: i32) -> (i32, i32) {
    %c0_i32 = arith.constant 0 : i32
    %c0_i32_0 = arith.constant 0 : i32
    return %arg0, %c0_i32 : i32, i32
  }
  func.func @transform_1(%arg0: i32) -> (i32, i32) {
    %c0_i32 = arith.constant 0 : i32
    %c0_i32_0 = arith.constant 0 : i32
    %c0_i32_1 = arith.constant 0 : i32
    return %c0_i32, %c0_i32_0 : i32, i32
  }
  func.func @transform_2(%arg0: i32) -> (i32, i32) {
    %c0_i32 = arith.constant 0 : i32
    %c0_i32_0 = arith.constant 0 : i32
    %c0_i32_1 = arith.constant 0 : i32
    return %c0_i32, %c0_i32_0 : i32, i32
  }
  func.func @transform_3(%arg0: i32) -> (i32, i32) {
    %c0_i32 = arith.constant 0 : i32
    %c0_i32_0 = arith.constant 0 : i32
    %c0_i32_1 = arith.constant 0 : i32
    return %c0_i32, %c0_i32_0 : i32, i32
  }
  func.func @transform_4(%arg0: i32) -> (i32, i32) {
    %c0_i32 = arith.constant 0 : i32
    %c0_i32_0 = arith.constant 0 : i32
    %c0_i32_1 = arith.constant 0 : i32
    return %c0_i32, %c0_i32_0 : i32, i32
  }
  func.func @transform_5(%arg0: i32) -> (i32, i32) {
    %c0_i32 = arith.constant 0 : i32
    %c0_i32_0 = arith.constant 0 : i32
    %c0_i32_1 = arith.constant 0 : i32
    return %c0_i32, %c0_i32_0 : i32, i32
  }
  func.func @transform_6(%arg0: i32) -> (i32, i32) {
    %c0_i32 = arith.constant 0 : i32
    %c0_i32_0 = arith.constant 0 : i32
    %c0_i32_1 = arith.constant 0 : i32
    return %c0_i32, %c0_i32_0 : i32, i32
  }
}

</mosaic_0001>

<llo_original>
// kernel: tpu_custom_call.1
$region0: #{tpu_custom_call.1}
  #allocation0 [shape = 'u32[]', space=smem, size = 0x4, offset = 0x4, fixed_abs, tag = 'smem constant byte address 0x4 - core index']
  #allocation1 [shape = 'u32[144,128]{1,0:T(1,128)}', space=vmem, size = 0x12000, scoped, tag = 'internal scratch']
  #allocation2 [shape = 'f32[1,128]{1,0:T(1,128)}', space=vmem, size = 0x200, scoped, tag = 'scratch operand']
  #allocation3 [shape = 'f32[1,128]{1,0:T(1,128)}', space=vmem, size = 0x200, scoped, tag = 'scratch operand']
  %s0 = inlined_call_operand.hbm [shape: f32[24,128], index: 0, kind: input, shape index: {}]
  %s1 = inlined_call_operand.hbm [shape: f32[128,128], index: 1, kind: input, shape index: {}]
  %s2 = inlined_call_operand.vmem [shape: f32[1,128], index: 2, kind: input, shape index: {}]
  %s3 = inlined_call_operand.vmem [shape: f32[1,128], index: 3, kind: input, shape index: {}]
  %s4 = inlined_call_operand.vmem [shape: f32[1,128], index: 4, kind: input, shape index: {}]
  %s5 = inlined_call_operand.hbm [shape: f32[1,128], index: 5, kind: output, shape index: {0}]
  %s6 = inlined_call_operand.hbm [shape: f32[1,128], index: 6, kind: output, shape index: {1}]
  %7 = xla_tuple %s5, %s6
  %s8 = sld [smem:[#allocation0]]
  $region81: #{tpu_custom_call.1} parent=0
    _
  %s10 = ssub.s32 1, %s8
  %s11 = scalar_select 0, %s10, %s8
  $region1: #{tpu_custom_call.1} parent=0
    #allocation4 [shape = 'u8[8192]{0}', space=vmem, size = 0x2000, scoped, tag = 'input window, operand 0']
    #allocation5 [shape = 's32[2]{0}', space=sflag, size = 0x8, scoped, tag = 'scoped memory for tpu_custom_call.1']
    #allocation6 [shape = 's32[2]{0}', space=sflag, size = 0x8, scoped, tag = 'scoped memory for tpu_custom_call.1']
    #allocation7 [shape = 'u8[65536]{0}', space=vmem, size = 0x10000, scoped, tag = 'input window, operand 1, single buffered']
    #allocation8 [shape = 's32[1]{0}', space=sflag, size = 0x4, scoped, tag = 'scoped memory for tpu_custom_call.1']
    #allocation9 [shape = 'u8[512]{0}', space=vmem, size = 0x400, scoped, tag = 'output window, operand 0, single buffered']
    #allocation10 [shape = 'u8[512]{0}', space=vmem, size = 0x400, scoped, tag = 'output window, operand 1, single buffered']
    #allocation11 [shape = 's32[1]{0}', space=sflag, size = 0x4, scoped, tag = 'scoped memory for tpu_custom_call.1']
    %12 = vsyncpa [#allocation5], 0
    %s13 = scalar_lea.sflag [#allocation5], 1
    %14 = vsyncpa %s13, 0
    %15 = vsyncpa [#allocation8], 0
    %16 = vsyncpa [#allocation6], 0
    %17 = vsyncpa [#allocation11], 0
    loop: start=0, step=1, limit=5
    $region2: #{tpu_custom_call.1} parent=1 // loop_pre_header
      _
    $region3: #{tpu_custom_call.1} parent=1 // loop_header
      %s19 = sphi 0, %s23
      %p20 = scmp.ge.s32.totalorder %s19, 5
      %s29 = sphi 0, %s31
      %s32 = sphi 0, %s29
      %s33 = sphi 0, %s32
      %s49 = sphi 0, %s33
      %s53 = sphi 0, %s53
      %s55 = sphi 0, %s53
      %s56 = sphi 0, %s55
      %s70 = sphi 0, %s56
      %s74 = sphi 0, %s74
      %s76 = sphi 0, %s74
      %s77 = sphi 0, %s76
      %s91 = sphi 0, %s77
      %s95 = sphi 0, %s95
      %s97 = sphi 0, %s95
      %s98 = sphi 0, %s97
      %s112 = sphi 0, %s98
      %s116 = sphi 0, %s116
      %s118 = sphi 0, %s116
      %s119 = sphi 0, %s118
      %s133 = sphi 0, %s119
      %s137 = sphi 0, %s137
      %s139 = sphi 0, %s137
      %s140 = sphi 0, %s139
      %s154 = sphi 0, %s140
      %s158 = sphi 0, %s158
      %s160 = sphi 0, %s158
      %s161 = sphi 0, %s160
      %s175 = sphi 0, %s161
    $region4: #{tpu_custom_call.1} parent=1 // loop_header_branch
      %22 = sbr.rel (%p20) target = $region8
    $region5: #{tpu_custom_call.1} parent=1 // loop_body
      %s24 = ssub.s32 %s19, 1
      %s25 = ssub.s32 %s19, 2
      %s26 = sadd.s32 %s19, 1
      %s27 = ssub.s32 %s19, %s26
      %p28 = scmp.eq.s32.totalorder %s27, 0
      %s30 = sadd.s32 %s29, 1
      %s31 = scalar_select %p28, %s29, %s30
      %p34 = pneg %p28
      %p35 = scmp.eq.s32.totalorder %s19, 2
      %p36 = por %p34, %p35
      %p37 = scmp.ne.s32.totalorder %s29, %s32
      %p38 = scmp.eq.s32.totalorder %s19, 0
      %p39 = por %p37, %p38
      %p40 = scmp.ne.s32.totalorder %s29, %s32
      %p41 = scmp.eq.s32.totalorder %s24, 2
      %p42 = por %p40, %p41
      %p43 = scmp.ne.s32.totalorder %s32, %s33
      %p44 = scmp.eq.s32.totalorder %s24, 0
      %p45 = por %p43, %p44
      %p46 = scmp.ne.s32.totalorder %s32, %s33
      %p47 = scmp.eq.s32.totalorder %s25, 2
      %p48 = por %p46, %p47
      %p50 = scmp.ne.s32.totalorder %s33, %s49
      %p51 = scmp.eq.s32.totalorder %s25, 0
      %p52 = por %p50, %p51
      %s54 = sadd.s32 %s53, 1
      %p57 = scmp.eq.s32.totalorder %s19, 2
      %p58 = scmp.ne.s32.totalorder %s53, %s55
      %p59 = scmp.eq.s32.totalorder %s19, 0
      %p60 = por %p58, %p59
      %p61 = scmp.ne.s32.totalorder %s53, %s55
      %p62 = scmp.eq.s32.totalorder %s24, 2
      %p63 = por %p61, %p62
      %p64 = scmp.ne.s32.totalorder %s55, %s56
      %p65 = scmp.eq.s32.totalorder %s24, 0
      %p66 = por %p64, %p65
      %p67 = scmp.ne.s32.totalorder %s55, %s56
      %p68 = scmp.eq.s32.totalorder %s25, 2
      %p69 = por %p67, %p68
      %p71 = scmp.ne.s32.totalorder %s56, %s70
      %p72 = scmp.eq.s32.totalorder %s25, 0
      %p73 = por %p71, %p72
      %s75 = sadd.s32 %s74, 1
      %p78 = scmp.eq.s32.totalorder %s19, 2
      %p79 = scmp.ne.s32.totalorder %s74, %s76
      %p80 = scmp.eq.s32.totalorder %s19, 0
      %p81 = por %p79, %p80
      %p82 = scmp.ne.s32.totalorder %s74, %s76
      %p83 = scmp.eq.s32.totalorder %s24, 2
      %p84 = por %p82, %p83
      %p85 = scmp.ne.s32.totalorder %s76, %s77
      %p86 = scmp.eq.s32.totalorder %s24, 0
      %p87 = por %p85, %p86
      %p88 = scmp.ne.s32.totalorder %s76, %s77
      %p89 = scmp.eq.s32.totalorder %s25, 2
      %p90 = por %p88, %p89
      %p92 = scmp.ne.s32.totalorder %s77, %s91
      %p93 = scmp.eq.s32.totalorder %s25, 0
      %p94 = por %p92, %p93
      %s96 = sadd.s32 %s95, 1
      %p99 = scmp.eq.s32.totalorder %s19, 2
      %p100 = scmp.ne.s32.totalorder %s95, %s97
      %p101 = scmp.eq.s32.totalorder %s19, 0
      %p102 = por %p100, %p101
      %p103 = scmp.ne.s32.totalorder %s95, %s97
      %p104 = scmp.eq.s32.totalorder %s24, 2
      %p105 = por %p103, %p104
      %p106 = scmp.ne.s32.totalorder %s97, %s98
      %p107 = scmp.eq.s32.totalorder %s24, 0
      %p108 = por %p106, %p107
      %p109 = scmp.ne.s32.totalorder %s97, %s98
      %p110 = scmp.eq.s32.totalorder %s25, 2
      %p111 = por %p109, %p110
      %p113 = scmp.ne.s32.totalorder %s98, %s112
      %p114 = scmp.eq.s32.totalorder %s25, 0
      %p115 = por %p113, %p114
      %s117 = sadd.s32 %s116, 1
      %p120 = scmp.eq.s32.totalorder %s19, 2
      %p121 = scmp.ne.s32.totalorder %s116, %s118
      %p122 = scmp.eq.s32.totalorder %s19, 0
      %p123 = por %p121, %p122
      %p124 = scmp.ne.s32.totalorder %s116, %s118
      %p125 = scmp.eq.s32.totalorder %s24, 2
      %p126 = por %p124, %p125
      %p127 = scmp.ne.s32.totalorder %s118, %s119
      %p128 = scmp.eq.s32.totalorder %s24, 0
      %p129 = por %p127, %p128
      %p130 = scmp.ne.s32.totalorder %s118, %s119
      %p131 = scmp.eq.s32.totalorder %s25, 2
      %p132 = por %p130, %p131
      %p134 = scmp.ne.s32.totalorder %s119, %s133
      %p135 = scmp.eq.s32.totalorder %s25, 0
      %p136 = por %p134, %p135
      %s138 = sadd.s32 %s137, 1
      %p141 = scmp.eq.s32.totalorder %s19, 2
      %p142 = scmp.ne.s32.totalorder %s137, %s139
      %p143 = scmp.eq.s32.totalorder %s19, 0
      %p144 = por %p142, %p143
      %p145 = scmp.ne.s32.totalorder %s137, %s139
      %p146 = scmp.eq.s32.totalorder %s24, 2
      %p147 = por %p145, %p146
      %p148 = scmp.ne.s32.totalorder %s139, %s140
      %p149 = scmp.eq.s32.totalorder %s24, 0
      %p150 = por %p148, %p149
      %p151 = scmp.ne.s32.totalorder %s139, %s140
      %p152 = scmp.eq.s32.totalorder %s25, 2
      %p153 = por %p151, %p152
      %p155 = scmp.ne.s32.totalorder %s140, %s154
      %p156 = scmp.eq.s32.totalorder %s25, 0
      %p157 = por %p155, %p156
      %s159 = sadd.s32 %s158, 1
      %p162 = scmp.eq.s32.totalorder %s19, 2
      %p163 = scmp.ne.s32.totalorder %s158, %s160
      %p164 = scmp.eq.s32.totalorder %s19, 0
      %p165 = por %p163, %p164
      %p166 = scmp.ne.s32.totalorder %s158, %s160
      %p167 = scmp.eq.s32.totalorder %s24, 2
      %p168 = por %p166, %p167
      %p169 = scmp.ne.s32.totalorder %s160, %s161
      %p170 = scmp.eq.s32.totalorder %s24, 0
      %p171 = por %p169, %p170
      %p172 = scmp.ne.s32.totalorder %s160, %s161
      %p173 = scmp.eq.s32.totalorder %s25, 2
      %p174 = por %p172, %p173
      %p176 = scmp.ne.s32.totalorder %s161, %s175
      %p177 = scmp.eq.s32.totalorder %s25, 0
      %p178 = por %p176, %p177
      %p179 = scmp.le.s32.totalorder 1, %s19
      %p180 = scmp.lt.s32.totalorder %s19, 4
      %p181 = pnand %p179, %p180
      %p182 = pneg %p181
      // Predicated region
      $region9: #{tpu_custom_call.1} parent=5 // pred_check
        _
      $region10: #{tpu_custom_call.1} parent=5 // pred_check_branch
        %184 = sbr.rel (%p181) target = $region12
      $region11: #{tpu_custom_call.1} parent=5 // pred_region
        %s185 = ssub.s32 %s19, 1
        // Predicated region
        $region13: #{tpu_custom_call.1} parent=11 // pred_check
          %p186 = pneg %p66
        $region14: #{tpu_custom_call.1} parent=11 // pred_check_branch
          %188 = sbr.rel (%p186) target = $region16
        $region15: #{tpu_custom_call.1} parent=11 // pred_region
          %s190 = ssub.s32 2048, 2048
          %191 = vsyncadd [#allocation8], %s190
          %s192 = sshll.u32 [#allocation7], 4
          %s193 = int_to_ptr.vmem [resolvable:$true] %s192
          %198 = dma.hbm_to_vmem [thread:$0]  %s1, 2048, %s193, [#allocation8], 128, 128, 8
        $region16: #{tpu_custom_call.1} parent=11 // pred_fallthru
          _
        // Predicated region
        $region17: #{tpu_custom_call.1} parent=11 // pred_check
          %p199 = pneg %p87
        $region18: #{tpu_custom_call.1} parent=11 // pred_check_branch
          %201 = sbr.rel (%p199) target = $region20
        $region19: #{tpu_custom_call.1} parent=11 // pred_region
          _
        $region20: #{tpu_custom_call.1} parent=11 // pred_fallthru
          _
        // Predicated region
        $region21: #{tpu_custom_call.1} parent=11 // pred_check
          %p202 = pneg %p108
        $region22: #{tpu_custom_call.1} parent=11 // pred_check_branch
          %204 = sbr.rel (%p202) target = $region24
        $region23: #{tpu_custom_call.1} parent=11 // pred_region
          _
        $region24: #{tpu_custom_call.1} parent=11 // pred_fallthru
          _
        // Predicated region
        $region25: #{tpu_custom_call.1} parent=11 // pred_check
          %p205 = pneg %p129
        $region26: #{tpu_custom_call.1} parent=11 // pred_check_branch
          %207 = sbr.rel (%p205) target = $region28
        $region27: #{tpu_custom_call.1} parent=11 // pred_region
          _
        $region28: #{tpu_custom_call.1} parent=11 // pred_fallthru
          _
      $region12: #{tpu_custom_call.1} parent=5 // pred_fallthru
        _
      %p208 = scmp.lt.s32.totalorder %s19, 3
      // Predicated region
      $region29: #{tpu_custom_call.1} parent=5 // pred_check
        %p209 = pneg %p208
      $region30: #{tpu_custom_call.1} parent=5 // pred_check_branch
        %211 = sbr.rel (%p209) target = $region32
      $region31: #{tpu_custom_call.1} parent=5 // pred_region
        // Predicated region
        $region33: #{tpu_custom_call.1} parent=31 // pred_check
          %p212 = pneg %p39
        $region34: #{tpu_custom_call.1} parent=31 // pred_check_branch
          %214 = sbr.rel (%p212) target = $region36
        $region35: #{tpu_custom_call.1} parent=31 // pred_region
          %s215 = sand.u32 %s29, 1
          %s216 = scalar_lea.sflag [#allocation5], %s215
          %s217 = sand.u32 %s29, 1
          %s218 = smul.addr %s217, 8
          %s219 = scalar_lea.vmem [#allocation4], %s218
          %s221 = ssub.s32 128, 128
          %222 = vsyncadd %s216, %s221
          %s223 = smul.addr %s19, 128
          %s224 = scalar_lea.hbm %s0, %s223
          %s226 = sshll.u32 %s219, 4
          %s227 = int_to_ptr.vmem [resolvable:$true] %s226
          %229 = dma.hbm_to_vmem [thread:$0]  %s224, 128, %s227, %s216
        $region36: #{tpu_custom_call.1} parent=31 // pred_fallthru
          _
      $region32: #{tpu_custom_call.1} parent=5 // pred_fallthru
        _
      %p230 = scmp.le.s32.totalorder 1, %s19
      %p231 = scmp.lt.s32.totalorder %s19, 4
      %p232 = pnand %p230, %p231
      %p233 = pneg %p232
      // Predicated region
      $region37: #{tpu_custom_call.1} parent=5 // pred_check
        _
      $region38: #{tpu_custom_call.1} parent=5 // pred_check_branch
        %235 = sbr.rel (%p232) target = $region40
      $region39: #{tpu_custom_call.1} parent=5 // pred_region
        %s236 = ssub.s32 %s19, 1
        %s237 = sand.u32 %s32, 1
        %s238 = scalar_lea.sflag [#allocation5], %s237
        %s239 = sand.u32 %s32, 1
        %s240 = smul.addr %s239, 8
        %s241 = scalar_lea.vmem [#allocation4], %s240
        // Predicated region
        $region41: #{tpu_custom_call.1} parent=39 // pred_check
          %p242 = pneg %p45
        $region42: #{tpu_custom_call.1} parent=39 // pred_check_branch
          %244 = sbr.rel (%p242) target = $region44
        $region43: #{tpu_custom_call.1} parent=39 // pred_region
          %245 = dma.done %s238, 128
        $region44: #{tpu_custom_call.1} parent=39 // pred_fallthru
          _
        // Predicated region
        $region45: #{tpu_custom_call.1} parent=39 // pred_check
          %p246 = pneg %p66
        $region46: #{tpu_custom_call.1} parent=39 // pred_check_branch
          %248 = sbr.rel (%p246) target = $region48
        $region47: #{tpu_custom_call.1} parent=39 // pred_region
          %249 = dma.done [#allocation8], 2048
        $region48: #{tpu_custom_call.1} parent=39 // pred_fallthru
          _
        %s250 = sand.u32 %s32, 1
        %s251 = scalar_lea.sflag [#allocation5], %s250
        %s252 = sand.u32 %s32, 1
        %s253 = smul.addr %s252, 8
        %s254 = scalar_lea.vmem [#allocation4], %s253
        %p255 = pneg %p45
        %p256 = pneg %p42
        %p257 = pneg %p66
        %p258 = pneg %p63
        %p259 = pneg %p87
        %p260 = pneg %p84
        %p261 = pneg %p108
        %p262 = pneg %p105
        %p263 = pneg %p129
        %p264 = pneg %p126
        %p265 = pneg %p150
        %p266 = pneg %p147
        %p267 = pneg %p171
        %p268 = pneg %p168
        %p269 = scmp.eq.s32.totalorder %s24, 0
        // Predicated region
        $region49: #{tpu_custom_call.1} parent=39 // pred_check
          %p270 = pneg %p269
        $region50: #{tpu_custom_call.1} parent=39 // pred_check_branch
          %272 = sbr.rel (%p270) target = $region52
        $region51: #{tpu_custom_call.1} parent=39 // pred_region
          %273 = vst [vmem:[#allocation2] sm:$0x1] 0.0
          %274 = vst [vmem:[#allocation3] sm:$0x1] 0.0
        $region52: #{tpu_custom_call.1} parent=39 // pred_fallthru
          _
        %v275 = vld [vmem:[%s241] sm:$0xff]
        %v276 = vld [vmem:[#allocation7] sm:$0xff]
        %v277 = vld [vmem:[#allocation7 + $0x8] sm:$0xff]
        %v278 = vld [vmem:[#allocation7 + $0x10] sm:$0xff]
        %v279 = vld [vmem:[#allocation7 + $0x18] sm:$0xff]
        %v280 = vld [vmem:[#allocation7 + $0x20] sm:$0xff]
        %v281 = vld [vmem:[#allocation7 + $0x28] sm:$0xff]
        %v282 = vld [vmem:[#allocation7 + $0x30] sm:$0xff]
        %v283 = vld [vmem:[#allocation7 + $0x38] sm:$0xff]
        %v284 = vld [vmem:[#allocation7 + $0x40] sm:$0xff]
        %v285 = vld [vmem:[#allocation7 + $0x48] sm:$0xff]
        %v286 = vld [vmem:[#allocation7 + $0x50] sm:$0xff]
        %v287 = vld [vmem:[#allocation7 + $0x58] sm:$0xff]
        %v288 = vld [vmem:[#allocation7 + $0x60] sm:$0xff]
        %v289 = vld [vmem:[#allocation7 + $0x68] sm:$0xff]
        %v290 = vld [vmem:[#allocation7 + $0x70] sm:$0xff]
        %v291 = vld [vmem:[#allocation7 + $0x78] sm:$0xff]
        %v292 = vld [vmem:[%s2] sm:$0x1]
        %v294 = vlaneseq
        %v295 = vshrl.u32 %v294, 7
        %v296 = vsub.s32 0, %v295
        %v297 = vrot.slane %v292, %v296
        %299 = vmatprep.subr.mxu0 0.0
        %300 = vmatpush1.msra.mxu0 %v291
        %301 = vmatprep.subr.mxu0 0.0
        %302 = vmatpush1.msra.mxu0 %v290
        %303 = vmatprep.subr.mxu0 0.0
        %304 = vmatpush1.msra.mxu0 %v289
        %305 = vmatprep.subr.mxu0 0.0
        %306 = vmatpush1.msra.mxu0 %v288
        %307 = vmatprep.subr.mxu0 0.0
        %308 = vmatpush1.msra.mxu0 %v287
        %309 = vmatprep.subr.mxu0 0.0
        %310 = vmatpush1.msra.mxu0 %v286
        %311 = vmatprep.subr.mxu0 0.0
        %312 = vmatpush1.msra.mxu0 %v285
        %313 = vmatprep.subr.mxu0 0.0
        %314 = vmatpush1.msra.mxu0 %v284
        %315 = vmatprep.subr.mxu0 0.0
        %316 = vmatpush1.msra.mxu0 %v283
        %317 = vmatprep.subr.mxu0 0.0
        %318 = vmatpush1.msra.mxu0 %v282
        %319 = vmatprep.subr.mxu0 0.0
        %320 = vmatpush1.msra.mxu0 %v281
        %321 = vmatprep.subr.mxu0 0.0
        %322 = vmatpush1.msra.mxu0 %v280
        %323 = vmatprep.subr.mxu0 0.0
        %324 = vmatpush1.msra.mxu0 %v279
        %325 = vmatprep.subr.mxu0 0.0
        %326 = vmatpush1.msra.mxu0 %v278
        %327 = vmatprep.subr.mxu0 0.0
        %328 = vmatpush1.msra.mxu0 %v277
        %329 = vmatprep.subr.mxu0 0.0
        %330 = vmatpush1.msra.mxu0 %v276
        %331 = vmatprep.subr.mxu0 0.0
        %332 = vmatpush2.msra.mxu0 0.0
        %333 = vmatprep.subr.mxu0 0.0
        %334 = vmatpush2.msra.mxu0 0.0
        %335 = vmatprep.subr.mxu0 0.0
        %336 = vmatpush2.msra.mxu0 0.0
        %337 = vmatprep.subr.mxu0 0.0
        %338 = vmatpush2.msra.mxu0 0.0
        %339 = vmatprep.subr.mxu0 0.0
        %340 = vmatpush2.msra.mxu0 0.0
        %341 = vmatprep.subr.mxu0 0.0
        %342 = vmatpush2.msra.mxu0 0.0
        %343 = vmatprep.subr.mxu0 0.0
        %344 = vmatpush2.msra.mxu0 0.0
        %345 = vmatprep.subr.mxu0 0.0
        %346 = vmatpush2.msra.mxu0 0.0
        %347 = vmatprep.subr.mxu0 0.0
        %348 = vmatpush2.msra.mxu0 0.0
        %349 = vmatprep.subr.mxu0 0.0
        %350 = vmatpush2.msra.mxu0 0.0
        %351 = vmatprep.subr.mxu0 0.0
        %352 = vmatpush2.msra.mxu0 0.0
        %353 = vmatprep.subr.mxu0 0.0
        %354 = vmatpush2.msra.mxu0 0.0
        %355 = vmatprep.subr.mxu0 0.0
        %356 = vmatpush2.msra.mxu0 0.0
        %357 = vmatprep.subr.mxu0 0.0
        %358 = vmatpush2.msra.mxu0 0.0
        %359 = vmatprep.subr.mxu0 0.0
        %360 = vmatpush2.msra.mxu0 0.0
        %361 = vmatprep.subr.mxu0 0.0
        %362 = vmatpush2.msra.mxu0 0.0
        %363 = vmatprep.mubr.f32.mxu0 0.0
        %364 = vmatmul.mubr.f32.gmra.mxu0 %v275
        %v365 = vpop.f32.mrf.mxu0
        %v366 = vadd.f32 %v297, %v365
        %v367 = vpop.f32.mrf.mxu0
        %368 = vdwg.mxu0
        %p369 = scmp.lt.s32.totalorder %s24, 2
        // Predicated region
        $region53: #{tpu_custom_call.1} parent=39 // pred_check
          %p370 = pneg %p369
        $region54: #{tpu_custom_call.1} parent=39 // pred_check_branch
          %372 = sbr.rel (%p370) target = $region56
        $region55: #{tpu_custom_call.1} parent=39 // pred_region
          %v373 = vld [vmem:[#allocation2] sm:$0x1]
          %v374 = vrot.slane %v366, 4
          %v375 = vadd.f32 %v366, %v374
          %v376 = vrot.slane %v375, 2
          %v377 = vadd.f32 %v375, %v376
          %v378 = vrot.slane %v377, 1
          %v379 = vadd.f32 %v377, %v378
          %v380 = vadd.f32 %v373, %v379
          %381 = vst [vmem:[#allocation2] sm:$0x1] %v380
          %v382 = vld [vmem:[#allocation3] sm:$0x1]
          %v383 = vmul.f32 %v366, %v366
          %v384 = vrot.slane %v383, 4
          %v385 = vadd.f32 %v383, %v384
          %v386 = vrot.slane %v385, 2
          %v387 = vadd.f32 %v385, %v386
          %v388 = vrot.slane %v387, 1
          %v389 = vadd.f32 %v387, %v388
          %v390 = vadd.f32 %v382, %v389
          %391 = vst [vmem:[#allocation3] sm:$0x1] %v390
        $region56: #{tpu_custom_call.1} parent=39 // pred_fallthru
          _
        %p392 = scmp.eq.s32.totalorder %s24, 2
        // Predicated region
        $region57: #{tpu_custom_call.1} parent=39 // pred_check
          %p393 = pneg %p392
        $region58: #{tpu_custom_call.1} parent=39 // pred_check_branch
          %395 = sbr.rel (%p393) target = $region60
        $region59: #{tpu_custom_call.1} parent=39 // pred_region
          %v396 = vlaneseq
          %v397 = vshrl.u32 %v396, 7
          %vm398 = vcmp.lt.s32.totalorder %v397, 4
          %v399 = vsel %vm398, 1, 0
          %vm400 = vcmp.eq.s32.totalorder %v399, 1
          %v401 = vsel %vm400, %v366, 0.0
          %v402 = vld [vmem:[#allocation2] sm:$0x1]
          %v403 = vrot.slane %v401, 4
          %v404 = vadd.f32 %v401, %v403
          %v405 = vrot.slane %v404, 2
          %v406 = vadd.f32 %v404, %v405
          %v407 = vrot.slane %v406, 1
          %v408 = vadd.f32 %v406, %v407
          %v409 = vadd.f32 %v402, %v408
          %410 = vst [vmem:[#allocation2] sm:$0x1] %v409
          %v411 = vld [vmem:[#allocation3] sm:$0x1]
          %v412 = vmul.f32 %v401, %v366
          %v413 = vrot.slane %v412, 4
          %v414 = vadd.f32 %v412, %v413
          %v415 = vrot.slane %v414, 2
          %v416 = vadd.f32 %v414, %v415
          %v417 = vrot.slane %v416, 1
          %v418 = vadd.f32 %v416, %v417
          %v419 = vadd.f32 %v411, %v418
          %420 = vst [vmem:[#allocation3] sm:$0x1] %v419
          %v421 = vld [vmem:[#allocation2] sm:$0x1]
          %v422 = vmul.f32 %v421, 0.05
          %v423 = vld [vmem:[#allocation3] sm:$0x1]
          %v424 = vmul.f32 %v423, 0.05
          %v425 = vmul.f32 %v422, %v422
          %v426 = vsub.f32 %v424, %v425
          %v427 = vmax.f32 %v426, 0.0
          %v428 = vld [vmem:[%s3] sm:$0x1]
          %v429 = vadd.f32 %v427, 1e-05
          %v430 = vrsqrt.pop %v429
          %v431 = vmul.f32 %v428, %v430
          %432 = vst [vmem:[#allocation9] sm:$0x1] %v431
          %v433 = vld [vmem:[%s4] sm:$0x1]
          %v434 = vmul.f32 %v422, %v431
          %v435 = vsub.f32 %v433, %v434
          %436 = vst [vmem:[#allocation10] sm:$0x1] %v435
        $region60: #{tpu_custom_call.1} parent=39 // pred_fallthru
          _
        // Predicated region
        $region61: #{tpu_custom_call.1} parent=39 // pred_check
          %p437 = pneg %p147
        $region62: #{tpu_custom_call.1} parent=39 // pred_check_branch
          %439 = sbr.rel (%p437) target = $region64
        $region63: #{tpu_custom_call.1} parent=39 // pred_region
          %s441 = ssub.s32 16, 16
          %442 = vsyncadd [#allocation6], %s441
          %s444 = sshll.u32 [#allocation9], 4
          %s445 = int_to_ptr.vmem [resolvable:$true] %s444
          %447 = dma.vmem_to_hbm [thread:$0]  %s445, 16, %s5, [#allocation6]
        $region64: #{tpu_custom_call.1} parent=39 // pred_fallthru
          _
        // Predicated region
        $region65: #{tpu_custom_call.1} parent=39 // pred_check
          %p448 = pneg %p168
        $region66: #{tpu_custom_call.1} parent=39 // pred_check_branch
          %450 = sbr.rel (%p448) target = $region68
        $region67: #{tpu_custom_call.1} parent=39 // pred_region
          %s452 = ssub.s32 16, 16
          %453 = vsyncadd [#allocation11], %s452
          %s455 = sshll.u32 [#allocation10], 4
          %s456 = int_to_ptr.vmem [resolvable:$true] %s455
          %458 = dma.vmem_to_hbm [thread:$0]  %s456, 16, %s6, [#allocation11]
        $region68: #{tpu_custom_call.1} parent=39 // pred_fallthru
          _
        // Predicated region
        $region69: #{tpu_custom_call.1} parent=39 // pred_check
          %p459 = pneg %p147
        $region70: #{tpu_custom_call.1} parent=39 // pred_check_branch
          %461 = sbr.rel (%p459) target = $region72
        $region71: #{tpu_custom_call.1} parent=39 // pred_region
          %462 = dma.done [#allocation6], 16
        $region72: #{tpu_custom_call.1} parent=39 // pred_fallthru
          _
        // Predicated region
        $region73: #{tpu_custom_call.1} parent=39 // pred_check
          %p463 = pneg %p168
        $region74: #{tpu_custom_call.1} parent=39 // pred_check_branch
          %465 = sbr.rel (%p463) target = $region76
        $region75: #{tpu_custom_call.1} parent=39 // pred_region
          %466 = dma.done [#allocation11], 16
        $region76: #{tpu_custom_call.1} parent=39 // pred_fallthru
          _
      $region40: #{tpu_custom_call.1} parent=5 // pred_fallthru
        _
      %p467 = scmp.le.s32.totalorder 2, %s19
      // Predicated region
      $region77: #{tpu_custom_call.1} parent=5 // pred_check
        %p468 = pneg %p467
      $region78: #{tpu_custom_call.1} parent=5 // pred_check_branch
        %470 = sbr.rel (%p468) target = $region80
      $region79: #{tpu_custom_call.1} parent=5 // pred_region
        %s471 = ssub.s32 %s19, 2
      $region80: #{tpu_custom_call.1} parent=5 // pred_fallthru
        _
    $region6: #{tpu_custom_call.1} parent=1 // loop_footer
      %s23 = sadd.s32 1, %s19
    $region7: #{tpu_custom_call.1} parent=1 // loop_footer_branch
      %18 = sbr.rel target = $region3
    $region8: #{tpu_custom_call.1} parent=1 // loop_exit
      _
    %472 = vsyncpa [#allocation5], 1
    %s473 = scalar_lea.sflag [#allocation5], 1
    %474 = vsyncpa %s473, 1
    %475 = vsyncpa [#allocation8], 1
    %476 = vsyncpa [#allocation6], 1
    %s477 = scalar_lea.sflag [#allocation6], 1
    %478 = vsyncpa %s477, 1
    %479 = vsyncpa [#allocation11], 1

</llo_original>
